<compile_context>
chip_gen: v7x
topology: tpu7x:2x2x1
jax: 0.10.0
libtpu: 0.0.40
codegen_flags: <defaults>
</compile_context>

<pallas_src>
import functools

import jax
import jax.numpy as jnp
from jax.experimental import pallas as pl
from jax.experimental.pallas import tpu as pltpu


def _round_up(x, m):
    return (x + m - 1) // m * m


def _double_conv_kernel(x_ref, w1_ref, w2_ref, b1_ref, b2_ref, mask_ref,
                        o_ref, r1_ref, h_ref, r2_ref, *, W):
    """Fused (conv3x3 -> folded-BN -> ReLU) x 2 for one row band of one image.

    x_ref   : (Ci, LJ1)   bf16  zero-padded, flattened input canvas of the band
                                (leading zero bakes in the +1 column offset)
    w1_ref  : (Cm, 9*Ci)  bf16  conv1 taps stacked into the contraction dim,
                                BN1 scale folded in; col = (ky*3 + kx)*Ci + ci
    w2_ref  : (Co, 9*Cm)  bf16  conv2 taps, BN2 scale folded in
    b1_ref  : (Cm, 1)     f32   folded BN1 shift
    b2_ref  : (Co, 1)     f32   folded BN2 shift
    mask_ref: (1, LI2)    f32   1.0 on real pixels of the intermediate canvas
    o_ref   : (Co, Lo)    f32   band output canvas (junk cols sliced by caller)
    r1_ref  : (9*Ci, LI2) bf16  scratch: tap-stacked conv1 RHS
    h_ref   : (Cm, LI2)   bf16  scratch: intermediate canvas (conv2 input)
    r2_ref  : (9*Cm, Lo)  bf16  scratch: tap-stacked conv2 RHS
    """
    Wp = W + 2
    Ci = x_ref.shape[0]
    Cm = h_ref.shape[0]
    LI2 = h_ref.shape[1]
    Lo = r2_ref.shape[1]

    # ---- conv1: stack the 9 shifted slabs once, ONE MXU matmul, BN+ReLU+mask
    for k in range(9):
        dy, dx = divmod(k, 3)
        s = dy * Wp + dx
        r1_ref[k * Ci:(k + 1) * Ci, :] = x_ref[:, s:s + LI2]
    acc1 = jnp.dot(w1_ref[...], r1_ref[...], preferred_element_type=jnp.float32)
    h_ref[...] = (jnp.maximum(acc1 + b1_ref[...], 0.0)
                  * mask_ref[...]).astype(h_ref.dtype)

    # ---- conv2: same, on the masked intermediate canvas --------------------
    for k in range(9):
        dy, dx = divmod(k, 3)
        s = dy * Wp + dx
        r2_ref[k * Cm:(k + 1) * Cm, :] = h_ref[:, s:s + Lo]
    acc2 = jnp.dot(w2_ref[...], r2_ref[...], preferred_element_type=jnp.float32)
    o_ref[...] = jnp.maximum(acc2 + b2_ref[...], 0.0).astype(o_ref.dtype)


def _choose_band_rows(H, C_in, C_mid, C_out, Wp, budget_bytes=8 << 20):
    """Largest band height Hb (a divisor of H, multiple of 8) whose per-band
    VMEM working set stays under ~budget; prefers >= 2 bands so the band grid
    axis keeps both v7x TensorCores busy even when N == 1.  Falls back to a
    single whole-image band when no such divisor exists."""
    per_row = Wp * (2 * (9 * C_in + 9 * C_mid + C_mid + 2 * C_in)   # bf16 pieces
                    + 4 * (C_mid + 3 * C_out))                      # f32 acc + out
    cap = max(1, budget_bytes // max(per_row, 1))
    if H > 1:
        cap = min(cap, H // 2)
    cands = [d for d in range(8, H, 8) if H % d == 0 and d <= cap]
    return max(cands) if cands else H


def _vmem_limit_bytes(Ci, Cm, Co, LJ1, LI2, Lo):
    """Explicit scoped-VMEM budget from the layout-padded block/scratch sizes,
    x2 headroom, clamped to [16 MiB, 64 MiB] (v7x physical VMEM is 64 MiB)."""
    def t(r, c, itemsize):
        return _round_up(r, 8 * (4 // itemsize)) * _round_up(c, 128) * itemsize
    est = (2 * t(Ci, LJ1, 2)                 # x band block (double-buffered)
           + 2 * t(1, LI2, 4)                # mask block
           + 2 * t(Co, Lo, 4)                # out block
           + 2 * (t(Cm, 9 * Ci, 2) + t(Co, 9 * Cm, 2)
                  + t(Cm, 1, 4) + t(Co, 1, 4))
           + t(9 * Ci, LI2, 2) + t(Cm, LI2, 2) + t(9 * Cm, Lo, 2)   # scratch
           + t(Cm, LI2, 4) + t(Co, Lo, 4))                          # f32 accs
    return int(min(64 << 20, max(16 << 20, 2 * est)))


def double_conv_pallas(x, w1, bn1, w2, bn2, *, eps=1e-5, band_rows=None):
    """DoubleConv forward (eval-mode BatchNorm), NCHW in / NCHW out.

    x  : (N, C_in, H, W) float32
    w1 : (C_mid, C_in, 3, 3)  conv1 weight (bias=False)
    bn1: (gamma, beta, running_mean, running_var), each (C_mid,)
    w2 : (C_out, C_mid, 3, 3) conv2 weight (bias=False)
    bn2: (gamma, beta, running_mean, running_var), each (C_out,)
    """
    f32, bf16 = jnp.float32, jnp.bfloat16
    N, C_in, H, W = x.shape
    C_mid = w1.shape[0]
    C_out = w2.shape[0]
    Wp = W + 2

    Hb = band_rows or _choose_band_rows(H, C_in, C_mid, C_out, Wp)
    assert H % Hb == 0, (H, Hb)
    n_bands = H // Hb
    Lo = Hb * Wp                      # band output-canvas length (lane-dense)
    LI2 = (Hb + 2) * Wp + 2           # intermediate canvas (conv2 input) length
    LJ1 = (Hb + 4) * Wp + 4           # band input-canvas length (halos + slack)

    # Channel dims rounded to sublane multiples -> aligned stacked-slab writes.
    Ci = _round_up(C_in, 8)
    Cm = _round_up(C_mid, 8)

    # Fold eval-mode BatchNorm: scale into the conv weights (exact), shift as bias.
    g1, be1, m1, v1 = bn1
    g2, be2, m2, v2 = bn2
    s1 = (g1 / jnp.sqrt(v1 + eps)).astype(f32)
    b1 = (be1 - m1 * s1).astype(f32)
    s2 = (g2 / jnp.sqrt(v2 + eps)).astype(f32)
    b2 = (be2 - m2 * s2).astype(f32)

    # Tap-stacked, BN-scaled, bf16 weights: column index = (ky*3 + kx)*C + c.
    w1_t = jnp.transpose(w1.astype(f32), (2, 3, 0, 1)).reshape(9, C_mid, C_in)
    w1_t = jnp.pad(w1_t, ((0, 0), (0, Cm - C_mid), (0, Ci - C_in)))
    w1s = (jnp.transpose(w1_t, (1, 0, 2)).reshape(Cm, 9 * Ci)
           * jnp.pad(s1, (0, Cm - C_mid))[:, None]).astype(bf16)
    w2_t = jnp.transpose(w2.astype(f32), (2, 3, 0, 1)).reshape(9, C_out, C_mid)
    w2_t = jnp.pad(w2_t, ((0, 0), (0, 0), (0, Cm - C_mid)))
    w2s = (jnp.transpose(w2_t, (1, 0, 2)).reshape(C_out, 9 * Cm)
           * s2[:, None]).astype(bf16)
    b1c = jnp.pad(b1, (0, Cm - C_mid)).reshape(Cm, 1)
    b2c = b2.reshape(C_out, 1)

    # Banded, halo'd, width-padded, flattened bf16 input canvases.
    # Rows: 2-row zero halo top/bottom; cols: 1 zero each side; plus 1 leading
    # zero (bakes the +1 output-column offset into the tap shifts) + 3 slack.
    x_pad = jnp.pad(x.astype(bf16),
                    ((0, 0), (0, Ci - C_in), (2, 2), (1, 1)))       # (N,Ci,H+4,Wp)
    x_bands = jnp.stack(
        [x_pad[:, :, b * Hb:b * Hb + Hb + 4, :] for b in range(n_bands)], axis=1)
    x_bands = x_bands.reshape(N, n_bands, Ci, (Hb + 4) * Wp)
    x_bands = jnp.pad(x_bands, ((0, 0), (0, 0), (0, 0), (1, 3)))    # (N,B,Ci,LJ1)

    # 1.0 on real pixels of each band's intermediate canvas: columns 1..W of
    # each row, rows whose global intermediate row is inside [0, H), no slack.
    p = jnp.arange(LI2, dtype=jnp.int32)
    col_ok = ((p % Wp) >= 1) & ((p % Wp) <= W) & (p < (Hb + 2) * Wp)
    g = (jnp.arange(n_bands, dtype=jnp.int32) * Hb)[:, None] - 1 + p[None, :] // Wp
    mask = (col_ok[None, :] & (g >= 0) & (g < H)).astype(f32)
    mask = mask.reshape(n_bands, 1, LI2)

    kernel = functools.partial(_double_conv_kernel, W=W)

    out = pl.pallas_call(
        kernel,
        out_shape=jax.ShapeDtypeStruct((N, n_bands, C_out, Lo), x.dtype),
        grid_spec=pltpu.PrefetchScalarGridSpec(
            num_scalar_prefetch=0,
            grid=(N, n_bands),
            in_specs=[
                pl.BlockSpec((None, None, Ci, LJ1), lambda n, b: (n, b, 0, 0)),
                pl.BlockSpec((Cm, 9 * Ci), lambda n, b: (0, 0)),
                pl.BlockSpec((C_out, 9 * Cm), lambda n, b: (0, 0)),
                pl.BlockSpec((Cm, 1), lambda n, b: (0, 0)),
                pl.BlockSpec((C_out, 1), lambda n, b: (0, 0)),
                pl.BlockSpec((None, 1, LI2), lambda n, b: (b, 0, 0)),
            ],
            out_specs=pl.BlockSpec((None, None, C_out, Lo),
                                   lambda n, b: (n, b, 0, 0)),
            scratch_shapes=[
                pltpu.VMEM((9 * Ci, LI2), bf16),   # tap-stacked conv1 RHS
                pltpu.VMEM((Cm, LI2), bf16),       # intermediate canvas
                pltpu.VMEM((9 * Cm, Lo), bf16),    # tap-stacked conv2 RHS
            ],
        ),
        compiler_params=pltpu.CompilerParams(
            # Batch and row-band axes are both embarrassingly parallel, so
            # v7x's two TensorCores both get work even for a single image.
            dimension_semantics=("parallel", "parallel"),
            vmem_limit_bytes=_vmem_limit_bytes(Ci, Cm, C_out, LJ1, LI2, Lo),
            # Let XLA fuse the pad / band-stack that produces x_bands into the
            # pallas_call input instead of materializing it in HBM.
            allow_input_fusion=[True, False, False, False, False, False],
        ),
    )(x_bands, w1s, w2s, b1c, b2c, mask)

    # (N, B, C_out, Hb*Wp) -> (N, C_out, H, Wp) -> drop the 2 junk cols/row.
    # XLA fuses the transpose + reshape into the single copy the final slice
    # performs anyway, so this costs one output pass (as before), not two.
    out = out.reshape(N, n_bands, C_out, Hb, Wp)
    out = jnp.transpose(out, (0, 2, 1, 3, 4)).reshape(N, C_out, H, Wp)
    return out[:, :, :, :W]


def _double_conv_ref(x, w1, bn1, w2, bn2, *, eps=1e-5):
    """Plain-JAX f32 reference: (conv3x3 -> eval BN -> ReLU) x 2 in NCHW."""
    def conv_bn_relu(h, w, bn):
        gamma, beta, mean, var = bn
        y = jax.lax.conv_general_dilated(
            h, w, window_strides=(1, 1), padding=((1, 1), (1, 1)),
            dimension_numbers=("NCHW", "OIHW", "NCHW"),
            precision=jax.lax.Precision.HIGHEST)
        s = gamma / jnp.sqrt(var + eps)
        b = beta - mean * s
        return jnp.maximum(y * s[None, :, None, None] + b[None, :, None, None], 0.0)

    return conv_bn_relu(conv_bn_relu(x, w1, bn1), w2, bn2)


if __name__ == "__main__":
    key = jax.random.PRNGKey(0)
    ks = jax.random.split(key, 11)

    # DoubleConv(in_channels=4, out_channels=8) -> mid_channels = 8 (default)
    N, C_in, C_out, H, W = 2, 4, 8, 16, 16
    C_mid = C_out

    x = jax.random.normal(ks[0], (N, C_in, H, W), dtype=jnp.float32)
    w1 = jax.random.normal(ks[1], (C_mid, C_in, 3, 3), dtype=jnp.float32) * 0.1
    bn1 = (jax.random.uniform(ks[2], (C_mid,), minval=0.5, maxval=1.5),
           jax.random.normal(ks[3], (C_mid,), dtype=jnp.float32) * 0.1,
           jax.random.normal(ks[4], (C_mid,), dtype=jnp.float32) * 0.1,
           jax.random.uniform(ks[5], (C_mid,), minval=0.5, maxval=1.5))
    w2 = jax.random.normal(ks[6], (C_out, C_mid, 3, 3), dtype=jnp.float32) * 0.1
    bn2 = (jax.random.uniform(ks[7], (C_out,), minval=0.5, maxval=1.5),
           jax.random.normal(ks[8], (C_out,), dtype=jnp.float32) * 0.1,
           jax.random.normal(ks[9], (C_out,), dtype=jnp.float32) * 0.1,
           jax.random.uniform(ks[10], (C_out,), minval=0.5, maxval=1.5))

    y = double_conv_pallas(x, w1, bn1, w2, bn2)
    y = jax.block_until_ready(y)

    ref = _double_conv_ref(x, w1, bn1, w2, bn2)
    assert y.shape == (N, C_out, H, W), y.shape
    # bf16-input error budget: inputs / weights / intermediate are rounded to
    # bf16 (unit roundoff ~2^-9) and accumulated over K = 9*C taps per conv in
    # f32, giving an expected max abs error of ~1e-2 at these magnitudes.  The
    # 5e-2 bound keeps ~4x margin on that budget while remaining far below any
    # structural (padding / shift / masking) error, which shows up at O(0.1-1).
    assert jnp.allclose(y, ref, atol=5e-2, rtol=5e-2), \
        float(jnp.max(jnp.abs(y - ref)))

    print("KERNEL_OK")
</pallas_src>

<mosaic_0001>
module attributes {stable_mosaic.version = 11 : i64} {
  func.func @_double_conv_kernel(%arg0: i32, %arg1: i32, %arg2: memref<1x1x8x220xbf16, #tpu.memory_space<vmem>>, %arg3: memref<8x72xbf16, #tpu.memory_space<vmem>>, %arg4: memref<8x72xbf16, #tpu.memory_space<vmem>>, %arg5: memref<8x1xf32, #tpu.memory_space<vmem>>, %arg6: memref<8x1xf32, #tpu.memory_space<vmem>>, %arg7: memref<1x1x182xf32, #tpu.memory_space<vmem>>, %arg8: memref<1x1x8x144xf32, #tpu.memory_space<vmem>>, %arg9: memref<72x182xbf16, #tpu.memory_space<vmem>>, %arg10: memref<8x182xbf16, #tpu.memory_space<vmem>>, %arg11: memref<72x144xbf16, #tpu.memory_space<vmem>>) attributes {dimension_semantics = [#tpu.dimension_semantics<parallel>, #tpu.dimension_semantics<parallel>], iteration_bounds = array<i64: 2, 2>, scalar_prefetch = 0 : i64, scratch_operands = 3 : i64, tpu.core_type = #tpu.core_type<tc>, window_params = [{transform_indices = @transform_0, window_bounds = array<i64: 1, 1, 8, 220>}, {pipeline_mode = #tpu.pipeline_mode<synchronous>, transform_indices = @transform_1, window_bounds = array<i64: 8, 72>}, {pipeline_mode = #tpu.pipeline_mode<synchronous>, transform_indices = @transform_2, window_bounds = array<i64: 8, 72>}, {pipeline_mode = #tpu.pipeline_mode<synchronous>, transform_indices = @transform_3, window_bounds = array<i64: 8, 1>}, {pipeline_mode = #tpu.pipeline_mode<synchronous>, transform_indices = @transform_4, window_bounds = array<i64: 8, 1>}, {transform_indices = @transform_5, window_bounds = array<i64: 1, 1, 182>}, {transform_indices = @transform_6, window_bounds = array<i64: 1, 1, 8, 144>}]} {
    %c0 = arith.constant 0 : index
    %c0_0 = arith.constant 0 : index
    %c0_1 = arith.constant 0 : index
    %c0_2 = arith.constant 0 : index
    %0 = vector.load %arg2[%c0, %c0_0, %c0_1, %c0_2] : memref<1x1x8x220xbf16, #tpu.memory_space<vmem>>, vector<1x1x8x182xbf16>
    %1 = vector.shape_cast %0 : vector<1x1x8x182xbf16> to vector<8x182xbf16>
    %c0_3 = arith.constant 0 : index
    %c0_4 = arith.constant 0 : index
    %2 = vector.load %arg9[%c0_3, %c0_4] : memref<72x182xbf16, #tpu.memory_space<vmem>>, vector<8x182xbf16>
    tpu.vector_store %arg9[%c0_3, %c0_4], %1 {strides = array<i32>} : memref<72x182xbf16, #tpu.memory_space<vmem>>, vector<8x182xbf16>,
    %c0_5 = arith.constant 0 : index
    %c0_6 = arith.constant 0 : index
    %c0_7 = arith.constant 0 : index
    %c1 = arith.constant 1 : index
    %3 = vector.load %arg2[%c0_5, %c0_6, %c0_7, %c1] : memref<1x1x8x220xbf16, #tpu.memory_space<vmem>>, vector<1x1x8x182xbf16>
    %4 = vector.shape_cast %3 : vector<1x1x8x182xbf16> to vector<8x182xbf16>
    %c8 = arith.constant 8 : index
    %c0_8 = arith.constant 0 : index
    %5 = vector.load %arg9[%c8, %c0_8] : memref<72x182xbf16, #tpu.memory_space<vmem>>, vector<8x182xbf16>
    tpu.vector_store %arg9[%c8, %c0_8], %4 {strides = array<i32>} : memref<72x182xbf16, #tpu.memory_space<vmem>>, vector<8x182xbf16>,
    %c0_9 = arith.constant 0 : index
    %c0_10 = arith.constant 0 : index
    %c0_11 = arith.constant 0 : index
    %c2 = arith.constant 2 : index
    %6 = vector.load %arg2[%c0_9, %c0_10, %c0_11, %c2] : memref<1x1x8x220xbf16, #tpu.memory_space<vmem>>, vector<1x1x8x182xbf16>
    %7 = vector.shape_cast %6 : vector<1x1x8x182xbf16> to vector<8x182xbf16>
    %c16 = arith.constant 16 : index
    %c0_12 = arith.constant 0 : index
    %8 = vector.load %arg9[%c16, %c0_12] : memref<72x182xbf16, #tpu.memory_space<vmem>>, vector<8x182xbf16>
    tpu.vector_store %arg9[%c16, %c0_12], %7 {strides = array<i32>} : memref<72x182xbf16, #tpu.memory_space<vmem>>, vector<8x182xbf16>,
    %c0_13 = arith.constant 0 : index
    %c0_14 = arith.constant 0 : index
    %c0_15 = arith.constant 0 : index
    %c18 = arith.constant 18 : index
    %9 = vector.load %arg2[%c0_13, %c0_14, %c0_15, %c18] : memref<1x1x8x220xbf16, #tpu.memory_space<vmem>>, vector<1x1x8x182xbf16>
    %10 = vector.shape_cast %9 : vector<1x1x8x182xbf16> to vector<8x182xbf16>
    %c24 = arith.constant 24 : index
    %c0_16 = arith.constant 0 : index
    %11 = vector.load %arg9[%c24, %c0_16] : memref<72x182xbf16, #tpu.memory_space<vmem>>, vector<8x182xbf16>
    tpu.vector_store %arg9[%c24, %c0_16], %10 {strides = array<i32>} : memref<72x182xbf16, #tpu.memory_space<vmem>>, vector<8x182xbf16>,
    %c0_17 = arith.constant 0 : index
    %c0_18 = arith.constant 0 : index
    %c0_19 = arith.constant 0 : index
    %c19 = arith.constant 19 : index
    %12 = vector.load %arg2[%c0_17, %c0_18, %c0_19, %c19] : memref<1x1x8x220xbf16, #tpu.memory_space<vmem>>, vector<1x1x8x182xbf16>
    %13 = vector.shape_cast %12 : vector<1x1x8x182xbf16> to vector<8x182xbf16>
    %c32 = arith.constant 32 : index
    %c0_20 = arith.constant 0 : index
    %14 = vector.load %arg9[%c32, %c0_20] : memref<72x182xbf16, #tpu.memory_space<vmem>>, vector<8x182xbf16>
    tpu.vector_store %arg9[%c32, %c0_20], %13 {strides = array<i32>} : memref<72x182xbf16, #tpu.memory_space<vmem>>, vector<8x182xbf16>,
    %c0_21 = arith.constant 0 : index
    %c0_22 = arith.constant 0 : index
    %c0_23 = arith.constant 0 : index
    %c20 = arith.constant 20 : index
    %15 = vector.load %arg2[%c0_21, %c0_22, %c0_23, %c20] : memref<1x1x8x220xbf16, #tpu.memory_space<vmem>>, vector<1x1x8x182xbf16>
    %16 = vector.shape_cast %15 : vector<1x1x8x182xbf16> to vector<8x182xbf16>
    %c40 = arith.constant 40 : index
    %c0_24 = arith.constant 0 : index
    %17 = vector.load %arg9[%c40, %c0_24] : memref<72x182xbf16, #tpu.memory_space<vmem>>, vector<8x182xbf16>
    tpu.vector_store %arg9[%c40, %c0_24], %16 {strides = array<i32>} : memref<72x182xbf16, #tpu.memory_space<vmem>>, vector<8x182xbf16>,
    %c0_25 = arith.constant 0 : index
    %c0_26 = arith.constant 0 : index
    %c0_27 = arith.constant 0 : index
    %c36 = arith.constant 36 : index
    %18 = vector.load %arg2[%c0_25, %c0_26, %c0_27, %c36] : memref<1x1x8x220xbf16, #tpu.memory_space<vmem>>, vector<1x1x8x182xbf16>
    %19 = vector.shape_cast %18 : vector<1x1x8x182xbf16> to vector<8x182xbf16>
    %c48 = arith.constant 48 : index
    %c0_28 = arith.constant 0 : index
    %20 = vector.load %arg9[%c48, %c0_28] : memref<72x182xbf16, #tpu.memory_space<vmem>>, vector<8x182xbf16>
    tpu.vector_store %arg9[%c48, %c0_28], %19 {strides = array<i32>} : memref<72x182xbf16, #tpu.memory_space<vmem>>, vector<8x182xbf16>,
    %c0_29 = arith.constant 0 : index
    %c0_30 = arith.constant 0 : index
    %c0_31 = arith.constant 0 : index
    %c37 = arith.constant 37 : index
    %21 = vector.load %arg2[%c0_29, %c0_30, %c0_31, %c37] : memref<1x1x8x220xbf16, #tpu.memory_space<vmem>>, vector<1x1x8x182xbf16>
    %22 = vector.shape_cast %21 : vector<1x1x8x182xbf16> to vector<8x182xbf16>
    %c56 = arith.constant 56 : index
    %c0_32 = arith.constant 0 : index
    %23 = vector.load %arg9[%c56, %c0_32] : memref<72x182xbf16, #tpu.memory_space<vmem>>, vector<8x182xbf16>
    tpu.vector_store %arg9[%c56, %c0_32], %22 {strides = array<i32>} : memref<72x182xbf16, #tpu.memory_space<vmem>>, vector<8x182xbf16>,
    %c0_33 = arith.constant 0 : index
    %c0_34 = arith.constant 0 : index
    %c0_35 = arith.constant 0 : index
    %c38 = arith.constant 38 : index
    %24 = vector.load %arg2[%c0_33, %c0_34, %c0_35, %c38] : memref<1x1x8x220xbf16, #tpu.memory_space<vmem>>, vector<1x1x8x182xbf16>
    %25 = vector.shape_cast %24 : vector<1x1x8x182xbf16> to vector<8x182xbf16>
    %c64 = arith.constant 64 : index
    %c0_36 = arith.constant 0 : index
    %26 = vector.load %arg9[%c64, %c0_36] : memref<72x182xbf16, #tpu.memory_space<vmem>>, vector<8x182xbf16>
    tpu.vector_store %arg9[%c64, %c0_36], %25 {strides = array<i32>} : memref<72x182xbf16, #tpu.memory_space<vmem>>, vector<8x182xbf16>,
    %c0_37 = arith.constant 0 : index
    %c0_38 = arith.constant 0 : index
    %27 = vector.load %arg3[%c0_37, %c0_38] : memref<8x72xbf16, #tpu.memory_space<vmem>>, vector<8x72xbf16>
    %c0_39 = arith.constant 0 : index
    %c0_40 = arith.constant 0 : index
    %28 = vector.load %arg9[%c0_39, %c0_40] : memref<72x182xbf16, #tpu.memory_space<vmem>>, vector<72x182xbf16>
    %cst = arith.constant dense<0.000000e+00> : vector<8x182xf32>
    %29 = tpu.matmul %27, %28, %cst {dimension_numbers = #tpu.dot_dimension_numbers<[1], [0], [0], [1], [0, 0, 1, 1], [], []>} : vector<8x72xbf16>, vector<72x182xbf16>, vector<8x182xf32> -> vector<8x182xf32>
    %c0_41 = arith.constant 0 : index
    %c0_42 = arith.constant 0 : index
    %30 = vector.load %arg5[%c0_41, %c0_42] : memref<8x1xf32, #tpu.memory_space<vmem>>, vector<8x1xf32>
    %31 = vector.broadcast %30 : vector<8x1xf32> to vector<8x182xf32>
    %32 = arith.addf %29, %31 : vector<8x182xf32>
    %cst_43 = arith.constant 0.000000e+00 : f32
    %33 = vector.broadcast %cst_43 : f32 to vector<8x182xf32>
    %34 = arith.maximumf %32, %33 : vector<8x182xf32>
    %c0_44 = arith.constant 0 : index
    %c0_45 = arith.constant 0 : index
    %c0_46 = arith.constant 0 : index
    %35 = vector.load %arg7[%c0_44, %c0_45, %c0_46] : memref<1x1x182xf32, #tpu.memory_space<vmem>>, vector<1x1x182xf32>
    %36 = vector.shape_cast %35 : vector<1x1x182xf32> to vector<1x182xf32>
    %37 = vector.broadcast %36 : vector<1x182xf32> to vector<8x182xf32>
    %38 = arith.mulf %34, %37 : vector<8x182xf32>
    %39 = arith.truncf %38 : vector<8x182xf32> to vector<8x182xbf16>
    %c0_47 = arith.constant 0 : index
    %c0_48 = arith.constant 0 : index
    %40 = vector.load %arg10[%c0_47, %c0_48] : memref<8x182xbf16, #tpu.memory_space<vmem>>, vector<8x182xbf16>
    tpu.vector_store %arg10[%c0_47, %c0_48], %39 {strides = array<i32>} : memref<8x182xbf16, #tpu.memory_space<vmem>>, vector<8x182xbf16>,
    %c0_49 = arith.constant 0 : index
    %c0_50 = arith.constant 0 : index
    %41 = vector.load %arg10[%c0_49, %c0_50] : memref<8x182xbf16, #tpu.memory_space<vmem>>, vector<8x144xbf16>
    %c0_51 = arith.constant 0 : index
    %c0_52 = arith.constant 0 : index
    %42 = vector.load %arg11[%c0_51, %c0_52] : memref<72x144xbf16, #tpu.memory_space<vmem>>, vector<8x144xbf16>
    tpu.vector_store %arg11[%c0_51, %c0_52], %41 {strides = array<i32>} : memref<72x144xbf16, #tpu.memory_space<vmem>>, vector<8x144xbf16>,
    %c0_53 = arith.constant 0 : index
    %c1_54 = arith.constant 1 : index
    %43 = vector.load %arg10[%c0_53, %c1_54] : memref<8x182xbf16, #tpu.memory_space<vmem>>, vector<8x144xbf16>
    %c8_55 = arith.constant 8 : index
    %c0_56 = arith.constant 0 : index
    %44 = vector.load %arg11[%c8_55, %c0_56] : memref<72x144xbf16, #tpu.memory_space<vmem>>, vector<8x144xbf16>
    tpu.vector_store %arg11[%c8_55, %c0_56], %43 {strides = array<i32>} : memref<72x144xbf16, #tpu.memory_space<vmem>>, vector<8x144xbf16>,
    %c0_57 = arith.constant 0 : index
    %c2_58 = arith.constant 2 : index
    %45 = vector.load %arg10[%c0_57, %c2_58] : memref<8x182xbf16, #tpu.memory_space<vmem>>, vector<8x144xbf16>
    %c16_59 = arith.constant 16 : index
    %c0_60 = arith.constant 0 : index
    %46 = vector.load %arg11[%c16_59, %c0_60] : memref<72x144xbf16, #tpu.memory_space<vmem>>, vector<8x144xbf16>
    tpu.vector_store %arg11[%c16_59, %c0_60], %45 {strides = array<i32>} : memref<72x144xbf16, #tpu.memory_space<vmem>>, vector<8x144xbf16>,
    %c0_61 = arith.constant 0 : index
    %c18_62 = arith.constant 18 : index
    %47 = vector.load %arg10[%c0_61, %c18_62] : memref<8x182xbf16, #tpu.memory_space<vmem>>, vector<8x144xbf16>
    %c24_63 = arith.constant 24 : index
    %c0_64 = arith.constant 0 : index
    %48 = vector.load %arg11[%c24_63, %c0_64] : memref<72x144xbf16, #tpu.memory_space<vmem>>, vector<8x144xbf16>
    tpu.vector_store %arg11[%c24_63, %c0_64], %47 {strides = array<i32>} : memref<72x144xbf16, #tpu.memory_space<vmem>>, vector<8x144xbf16>,
    %c0_65 = arith.constant 0 : index
    %c19_66 = arith.constant 19 : index
    %49 = vector.load %arg10[%c0_65, %c19_66] : memref<8x182xbf16, #tpu.memory_space<vmem>>, vector<8x144xbf16>
    %c32_67 = arith.constant 32 : index
    %c0_68 = arith.constant 0 : index
    %50 = vector.load %arg11[%c32_67, %c0_68] : memref<72x144xbf16, #tpu.memory_space<vmem>>, vector<8x144xbf16>
    tpu.vector_store %arg11[%c32_67, %c0_68], %49 {strides = array<i32>} : memref<72x144xbf16, #tpu.memory_space<vmem>>, vector<8x144xbf16>,
    %c0_69 = arith.constant 0 : index
    %c20_70 = arith.constant 20 : index
    %51 = vector.load %arg10[%c0_69, %c20_70] : memref<8x182xbf16, #tpu.memory_space<vmem>>, vector<8x144xbf16>
    %c40_71 = arith.constant 40 : index
    %c0_72 = arith.constant 0 : index
    %52 = vector.load %arg11[%c40_71, %c0_72] : memref<72x144xbf16, #tpu.memory_space<vmem>>, vector<8x144xbf16>
    tpu.vector_store %arg11[%c40_71, %c0_72], %51 {strides = array<i32>} : memref<72x144xbf16, #tpu.memory_space<vmem>>, vector<8x144xbf16>,
    %c0_73 = arith.constant 0 : index
    %c36_74 = arith.constant 36 : index
    %53 = vector.load %arg10[%c0_73, %c36_74] : memref<8x182xbf16, #tpu.memory_space<vmem>>, vector<8x144xbf16>
    %c48_75 = arith.constant 48 : index
    %c0_76 = arith.constant 0 : index
    %54 = vector.load %arg11[%c48_75, %c0_76] : memref<72x144xbf16, #tpu.memory_space<vmem>>, vector<8x144xbf16>
    tpu.vector_store %arg11[%c48_75, %c0_76], %53 {strides = array<i32>} : memref<72x144xbf16, #tpu.memory_space<vmem>>, vector<8x144xbf16>,
    %c0_77 = arith.constant 0 : index
    %c37_78 = arith.constant 37 : index
    %55 = vector.load %arg10[%c0_77, %c37_78] : memref<8x182xbf16, #tpu.memory_space<vmem>>, vector<8x144xbf16>
    %c56_79 = arith.constant 56 : index
    %c0_80 = arith.constant 0 : index
    %56 = vector.load %arg11[%c56_79, %c0_80] : memref<72x144xbf16, #tpu.memory_space<vmem>>, vector<8x144xbf16>
    tpu.vector_store %arg11[%c56_79, %c0_80], %55 {strides = array<i32>} : memref<72x144xbf16, #tpu.memory_space<vmem>>, vector<8x144xbf16>,
    %c0_81 = arith.constant 0 : index
    %c38_82 = arith.constant 38 : index
    %57 = vector.load %arg10[%c0_81, %c38_82] : memref<8x182xbf16, #tpu.memory_space<vmem>>, vector<8x144xbf16>
    %c64_83 = arith.constant 64 : index
    %c0_84 = arith.constant 0 : index
    %58 = vector.load %arg11[%c64_83, %c0_84] : memref<72x144xbf16, #tpu.memory_space<vmem>>, vector<8x144xbf16>
    tpu.vector_store %arg11[%c64_83, %c0_84], %57 {strides = array<i32>} : memref<72x144xbf16, #tpu.memory_space<vmem>>, vector<8x144xbf16>,
    %c0_85 = arith.constant 0 : index
    %c0_86 = arith.constant 0 : index
    %59 = vector.load %arg4[%c0_85, %c0_86] : memref<8x72xbf16, #tpu.memory_space<vmem>>, vector<8x72xbf16>
    %c0_87 = arith.constant 0 : index
    %c0_88 = arith.constant 0 : index
    %60 = vector.load %arg11[%c0_87, %c0_88] : memref<72x144xbf16, #tpu.memory_space<vmem>>, vector<72x144xbf16>
    %cst_89 = arith.constant dense<0.000000e+00> : vector<8x144xf32>
    %61 = tpu.matmul %59, %60, %cst_89 {dimension_numbers = #tpu.dot_dimension_numbers<[1], [0], [0], [1], [0, 0, 1, 1], [], []>} : vector<8x72xbf16>, vector<72x144xbf16>, vector<8x144xf32> -> vector<8x144xf32>
    %c0_90 = arith.constant 0 : index
    %c0_91 = arith.constant 0 : index
    %62 = vector.load %arg6[%c0_90, %c0_91] : memref<8x1xf32, #tpu.memory_space<vmem>>, vector<8x1xf32>
    %63 = vector.broadcast %62 : vector<8x1xf32> to vector<8x144xf32>
    %64 = arith.addf %61, %63 : vector<8x144xf32>
    %cst_92 = arith.constant 0.000000e+00 : f32
    %65 = vector.broadcast %cst_92 : f32 to vector<8x144xf32>
    %66 = arith.maximumf %64, %65 : vector<8x144xf32>
    %c0_93 = arith.constant 0 : index
    %c0_94 = arith.constant 0 : index
    %c0_95 = arith.constant 0 : index
    %c0_96 = arith.constant 0 : index
    %67 = vector.load %arg8[%c0_93, %c0_94, %c0_95, %c0_96] : memref<1x1x8x144xf32, #tpu.memory_space<vmem>>, vector<1x1x8x144xf32>
    %68 = vector.shape_cast %67 : vector<1x1x8x144xf32> to vector<8x144xf32>
    %69 = vector.shape_cast %66 : vector<8x144xf32> to vector<1x1x8x144xf32>
    tpu.vector_store %arg8[%c0_93, %c0_94, %c0_95, %c0_96], %69 {strides = array<i32>} : memref<1x1x8x144xf32, #tpu.memory_space<vmem>>, vector<1x1x8x144xf32>,
    return
  }
  func.func @transform_0(%arg0: i32, %arg1: i32) -> (i32, i32, i32, i32) {
    %c0_i32 = arith.constant 0 : i32
    %c0_i32_0 = arith.constant 0 : i32
    %c0_i32_1 = arith.constant 0 : i32
    return %arg0, %arg1, %c0_i32, %c0_i32_0 : i32, i32, i32, i32
  }
  func.func @transform_1(%arg0: i32, %arg1: i32) -> (i32, i32) {
    %c0_i32 = arith.constant 0 : i32
    %c0_i32_0 = arith.constant 0 : i32
    %c0_i32_1 = arith.constant 0 : i32
    return %c0_i32, %c0_i32_0 : i32, i32
  }
  func.func @transform_2(%arg0: i32, %arg1: i32) -> (i32, i32) {
    %c0_i32 = arith.constant 0 : i32
    %c0_i32_0 = arith.constant 0 : i32
    %c0_i32_1 = arith.constant 0 : i32
    return %c0_i32, %c0_i32_0 : i32, i32
  }
  func.func @transform_3(%arg0: i32, %arg1: i32) -> (i32, i32) {
    %c0_i32 = arith.constant 0 : i32
    %c0_i32_0 = arith.constant 0 : i32
    %c0_i32_1 = arith.constant 0 : i32
    return %c0_i32, %c0_i32_0 : i32, i32
  }
  func.func @transform_4(%arg0: i32, %arg1: i32) -> (i32, i32) {
    %c0_i32 = arith.constant 0 : i32
    %c0_i32_0 = arith.constant 0 : i32
    %c0_i32_1 = arith.constant 0 : i32
    return %c0_i32, %c0_i32_0 : i32, i32
  }
  func.func @transform_5(%arg0: i32, %arg1: i32) -> (i32, i32, i32) {
    %c0_i32 = arith.constant 0 : i32
    %c0_i32_0 = arith.constant 0 : i32
    %c0_i32_1 = arith.constant 0 : i32
    return %arg1, %c0_i32, %c0_i32_0 : i32, i32, i32
  }
  func.func @transform_6(%arg0: i32, %arg1: i32) -> (i32, i32, i32, i32) {
    %c0_i32 = arith.constant 0 : i32
    %c0_i32_0 = arith.constant 0 : i32
    %c0_i32_1 = arith.constant 0 : i32
    return %arg0, %arg1, %c0_i32, %c0_i32_0 : i32, i32, i32, i32
  }
}

</mosaic_0001>

<llo_original>
// kernel: tpu_custom_call.1
$region0: #{tpu_custom_call.1}
  #allocation0 [shape = 'u32[]', space=smem, size = 0x4, offset = 0x4, fixed_abs, tag = 'smem constant byte address 0x4 - core index']
  #allocation1 [shape = 'u32[144,128]{1,0:T(1,128)}', space=vmem, size = 0x12000, scoped, tag = 'internal scratch']
  #allocation2 [shape = 'bf16[72,182]{1,0:T(8,128)(2,1)}', space=vmem, size = 0x9000, scoped, tag = 'scratch operand']
  #allocation3 [shape = 'bf16[8,182]{1,0:T(8,128)(2,1)}', space=vmem, size = 0x1000, scoped, tag = 'scratch operand']
  #allocation4 [shape = 'bf16[72,144]{1,0:T(8,128)(2,1)}', space=vmem, size = 0x9000, scoped, tag = 'scratch operand']
  %s0 = inlined_call_operand.hbm [shape: bf16[2,2,8,220], index: 0, kind: input, shape index: {}]
  %s1 = inlined_call_operand.vmem [shape: bf16[8,72], index: 1, kind: input, shape index: {}]
  %s2 = inlined_call_operand.vmem [shape: bf16[8,72], index: 2, kind: input, shape index: {}]
  %s3 = inlined_call_operand.vmem [shape: f32[8,1], index: 3, kind: input, shape index: {}]
  %s4 = inlined_call_operand.vmem [shape: f32[8,1], index: 4, kind: input, shape index: {}]
  %s5 = inlined_call_operand.vmem [shape: f32[2,1,182], index: 5, kind: input, shape index: {}]
  %s6 = inlined_call_operand.hbm [shape: f32[2,2,8,144], index: 6, kind: output, shape index: {}]
  %s7 = sld [smem:[#allocation0]]
  $region61: #{tpu_custom_call.1} parent=0
    _
  %s9 = ssub.s32 1, %s7
  %s10 = scalar_select 0, %s9, %s7
  $region1: #{tpu_custom_call.1} parent=0
    #allocation5 [shape = 'u8[8192]{0}', space=vmem, size = 0x2000, scoped, tag = 'input window, operand 0']
    #allocation6 [shape = 's32[2]{0}', space=sflag, size = 0x8, scoped, tag = 'scoped memory for tpu_custom_call.1']
    #allocation7 [shape = 's32[2]{0}', space=sflag, size = 0x8, scoped, tag = 'scoped memory for tpu_custom_call.1']
    #allocation8 [shape = 'u8[16384]{0}', space=vmem, size = 0x4000, scoped, tag = 'output window, operand 0']
    %11 = vsyncpa [#allocation6], 0
    %s12 = scalar_lea.sflag [#allocation6], 1
    %13 = vsyncpa %s12, 0
    %14 = vsyncpa [#allocation7], 0
    %s15 = scalar_lea.sflag [#allocation7], 1
    %16 = vsyncpa %s15, 0
    loop: start=0, step=1, limit=6
    $region2: #{tpu_custom_call.1} parent=1 // loop_pre_header
      _
    $region3: #{tpu_custom_call.1} parent=1 // loop_header
      %s18 = sphi 0, %s22
      %p19 = scmp.ge.s32.totalorder %s18, 6
      %s25 = sphi 0, %s37
      %s26 = sphi 0, %s33
      %s27 = sphi 0, %s25
      %s28 = sphi 0, %s26
      %s29 = sphi 0, %s27
      %s30 = sphi 0, %s28
      %s42 = sphi 0, %s44
      %s45 = sphi 0, %s42
      %s46 = sphi 0, %s45
      %s62 = sphi 0, %s46
      %s66 = sphi 0, %s66
      %s68 = sphi 0, %s66
      %s69 = sphi 0, %s68
      %s83 = sphi 0, %s69
      %s87 = sphi 0, %s87
      %s89 = sphi 0, %s87
      %s90 = sphi 0, %s89
      %s104 = sphi 0, %s90
      %s108 = sphi 0, %s108
      %s110 = sphi 0, %s108
      %s111 = sphi 0, %s110
      %s125 = sphi 0, %s111
      %s129 = sphi 0, %s129
      %s131 = sphi 0, %s129
      %s132 = sphi 0, %s131
      %s146 = sphi 0, %s132
      %s152 = sphi 0, %s154
      %s155 = sphi 0, %s152
      %s156 = sphi 0, %s155
      %s172 = sphi 0, %s156
      %s180 = sphi 0, %s182
      %s183 = sphi 0, %s180
      %s184 = sphi 0, %s183
      %s200 = sphi 0, %s184
    $region4: #{tpu_custom_call.1} parent=1 // loop_header_branch
      %21 = sbr.rel (%p19) target = $region8
    $region5: #{tpu_custom_call.1} parent=1 // loop_body
      %s23 = ssub.s32 %s18, 1
      %s24 = ssub.s32 %s18, 2
      %s31 = sadd.s32 1, %s26
      %p32 = scmp.ge.s32.totalorder %s31, 2
      %s33 = scalar_select %p32, 0, %s31
      %s34 = sadd.s32 1, %s25
      %s35 = scalar_select %p32, %s34, %s25
      %p36 = scmp.ge.s32.totalorder %s35, 2
      %s37 = scalar_select %p36, 0, %s35
      %s38 = ssub.s32 %s25, %s37
      %s39 = ssub.s32 %s26, %s33
      %s40 = sor.u32 %s38, %s39
      %p41 = scmp.eq.s32.totalorder %s40, 0
      %s43 = sadd.s32 %s42, 1
      %s44 = scalar_select %p41, %s42, %s43
      %p47 = pneg %p41
      %p48 = scmp.eq.s32.totalorder %s18, 3
      %p49 = por %p47, %p48
      %p50 = scmp.ne.s32.totalorder %s42, %s45
      %p51 = scmp.eq.s32.totalorder %s18, 0
      %p52 = por %p50, %p51
      %p53 = scmp.ne.s32.totalorder %s42, %s45
      %p54 = scmp.eq.s32.totalorder %s23, 3
      %p55 = por %p53, %p54
      %p56 = scmp.ne.s32.totalorder %s45, %s46
      %p57 = scmp.eq.s32.totalorder %s23, 0
      %p58 = por %p56, %p57
      %p59 = scmp.ne.s32.totalorder %s45, %s46
      %p60 = scmp.eq.s32.totalorder %s24, 3
      %p61 = por %p59, %p60
      %p63 = scmp.ne.s32.totalorder %s46, %s62
      %p64 = scmp.eq.s32.totalorder %s24, 0
      %p65 = por %p63, %p64
      %s67 = sadd.s32 %s66, 1
      %p70 = scmp.eq.s32.totalorder %s18, 3
      %p71 = scmp.ne.s32.totalorder %s66, %s68
      %p72 = scmp.eq.s32.totalorder %s18, 0
      %p73 = por %p71, %p72
      %p74 = scmp.ne.s32.totalorder %s66, %s68
      %p75 = scmp.eq.s32.totalorder %s23, 3
      %p76 = por %p74, %p75
      %p77 = scmp.ne.s32.totalorder %s68, %s69
      %p78 = scmp.eq.s32.totalorder %s23, 0
      %p79 = por %p77, %p78
      %p80 = scmp.ne.s32.totalorder %s68, %s69
      %p81 = scmp.eq.s32.totalorder %s24, 3
      %p82 = por %p80, %p81
      %p84 = scmp.ne.s32.totalorder %s69, %s83
      %p85 = scmp.eq.s32.totalorder %s24, 0
      %p86 = por %p84, %p85
      %s88 = sadd.s32 %s87, 1
      %p91 = scmp.eq.s32.totalorder %s18, 3
      %p92 = scmp.ne.s32.totalorder %s87, %s89
      %p93 = scmp.eq.s32.totalorder %s18, 0
      %p94 = por %p92, %p93
      %p95 = scmp.ne.s32.totalorder %s87, %s89
      %p96 = scmp.eq.s32.totalorder %s23, 3
      %p97 = por %p95, %p96
      %p98 = scmp.ne.s32.totalorder %s89, %s90
      %p99 = scmp.eq.s32.totalorder %s23, 0
      %p100 = por %p98, %p99
      %p101 = scmp.ne.s32.totalorder %s89, %s90
      %p102 = scmp.eq.s32.totalorder %s24, 3
      %p103 = por %p101, %p102
      %p105 = scmp.ne.s32.totalorder %s90, %s104
      %p106 = scmp.eq.s32.totalorder %s24, 0
      %p107 = por %p105, %p106
      %s109 = sadd.s32 %s108, 1
      %p112 = scmp.eq.s32.totalorder %s18, 3
      %p113 = scmp.ne.s32.totalorder %s108, %s110
      %p114 = scmp.eq.s32.totalorder %s18, 0
      %p115 = por %p113, %p114
      %p116 = scmp.ne.s32.totalorder %s108, %s110
      %p117 = scmp.eq.s32.totalorder %s23, 3
      %p118 = por %p116, %p117
      %p119 = scmp.ne.s32.totalorder %s110, %s111
      %p120 = scmp.eq.s32.totalorder %s23, 0
      %p121 = por %p119, %p120
      %p122 = scmp.ne.s32.totalorder %s110, %s111
      %p123 = scmp.eq.s32.totalorder %s24, 3
      %p124 = por %p122, %p123
      %p126 = scmp.ne.s32.totalorder %s111, %s125
      %p127 = scmp.eq.s32.totalorder %s24, 0
      %p128 = por %p126, %p127
      %s130 = sadd.s32 %s129, 1
      %p133 = scmp.eq.s32.totalorder %s18, 3
      %p134 = scmp.ne.s32.totalorder %s129, %s131
      %p135 = scmp.eq.s32.totalorder %s18, 0
      %p136 = por %p134, %p135
      %p137 = scmp.ne.s32.totalorder %s129, %s131
      %p138 = scmp.eq.s32.totalorder %s23, 3
      %p139 = por %p137, %p138
      %p140 = scmp.ne.s32.totalorder %s131, %s132
      %p141 = scmp.eq.s32.totalorder %s23, 0
      %p142 = por %p140, %p141
      %p143 = scmp.ne.s32.totalorder %s131, %s132
      %p144 = scmp.eq.s32.totalorder %s24, 3
      %p145 = por %p143, %p144
      %p147 = scmp.ne.s32.totalorder %s132, %s146
      %p148 = scmp.eq.s32.totalorder %s24, 0
      %p149 = por %p147, %p148
      %s150 = ssub.s32 %s26, %s33
      %p151 = scmp.eq.s32.totalorder %s150, 0
      %s153 = sadd.s32 %s152, 1
      %s154 = scalar_select %p151, %s152, %s153
      %p157 = pneg %p151
      %p158 = scmp.eq.s32.totalorder %s18, 3
      %p159 = por %p157, %p158
      %p160 = scmp.ne.s32.totalorder %s152, %s155
      %p161 = scmp.eq.s32.totalorder %s18, 0
      %p162 = por %p160, %p161
      %p163 = scmp.ne.s32.totalorder %s152, %s155
      %p164 = scmp.eq.s32.totalorder %s23, 3
      %p165 = por %p163, %p164
      %p166 = scmp.ne.s32.totalorder %s155, %s156
      %p167 = scmp.eq.s32.totalorder %s23, 0
      %p168 = por %p166, %p167
      %p169 = scmp.ne.s32.totalorder %s155, %s156
      %p170 = scmp.eq.s32.totalorder %s24, 3
      %p171 = por %p169, %p170
      %p173 = scmp.ne.s32.totalorder %s156, %s172
      %p174 = scmp.eq.s32.totalorder %s24, 0
      %p175 = por %p173, %p174
      %s176 = ssub.s32 %s25, %s37
      %s177 = ssub.s32 %s26, %s33
      %s178 = sor.u32 %s176, %s177
      %p179 = scmp.eq.s32.totalorder %s178, 0
      %s181 = sadd.s32 %s180, 1
      %s182 = scalar_select %p179, %s180, %s181
      %p185 = pneg %p179
      %p186 = scmp.eq.s32.totalorder %s18, 3
      %p187 = por %p185, %p186
      %p188 = scmp.ne.s32.totalorder %s180, %s183
      %p189 = scmp.eq.s32.totalorder %s18, 0
      %p190 = por %p188, %p189
      %p191 = scmp.ne.s32.totalorder %s180, %s183
      %p192 = scmp.eq.s32.totalorder %s23, 3
      %p193 = por %p191, %p192
      %p194 = scmp.ne.s32.totalorder %s183, %s184
      %p195 = scmp.eq.s32.totalorder %s23, 0
      %p196 = por %p194, %p195
      %p197 = scmp.ne.s32.totalorder %s183, %s184
      %p198 = scmp.eq.s32.totalorder %s24, 3
      %p199 = por %p197, %p198
      %p201 = scmp.ne.s32.totalorder %s184, %s200
      %p202 = scmp.eq.s32.totalorder %s24, 0
      %p203 = por %p201, %p202
      %p204 = scmp.le.s32.totalorder 1, %s18
      %p205 = scmp.lt.s32.totalorder %s18, 5
      %p206 = pnand %p204, %p205
      %p207 = pneg %p206
      // Predicated region
      $region9: #{tpu_custom_call.1} parent=5 // pred_check
        _
      $region10: #{tpu_custom_call.1} parent=5 // pred_check_branch
        %209 = sbr.rel (%p206) target = $region12
      $region11: #{tpu_custom_call.1} parent=5 // pred_region
        %s210 = ssub.s32 %s18, 1
        // Predicated region
        $region13: #{tpu_custom_call.1} parent=11 // pred_check
          %p211 = pneg %p79
        $region14: #{tpu_custom_call.1} parent=11 // pred_check_branch
          %213 = sbr.rel (%p211) target = $region16
        $region15: #{tpu_custom_call.1} parent=11 // pred_region
          _
        $region16: #{tpu_custom_call.1} parent=11 // pred_fallthru
          _
        // Predicated region
        $region17: #{tpu_custom_call.1} parent=11 // pred_check
          %p214 = pneg %p100
        $region18: #{tpu_custom_call.1} parent=11 // pred_check_branch
          %216 = sbr.rel (%p214) target = $region20
        $region19: #{tpu_custom_call.1} parent=11 // pred_region
          _
        $region20: #{tpu_custom_call.1} parent=11 // pred_fallthru
          _
        // Predicated region
        $region21: #{tpu_custom_call.1} parent=11 // pred_check
          %p217 = pneg %p121
        $region22: #{tpu_custom_call.1} parent=11 // pred_check_branch
          %219 = sbr.rel (%p217) target = $region24
        $region23: #{tpu_custom_call.1} parent=11 // pred_region
          _
        $region24: #{tpu_custom_call.1} parent=11 // pred_fallthru
          _
        // Predicated region
        $region25: #{tpu_custom_call.1} parent=11 // pred_check
          %p220 = pneg %p142
        $region26: #{tpu_custom_call.1} parent=11 // pred_check_branch
          %222 = sbr.rel (%p220) target = $region28
        $region27: #{tpu_custom_call.1} parent=11 // pred_region
          _
        $region28: #{tpu_custom_call.1} parent=11 // pred_fallthru
          _
      $region12: #{tpu_custom_call.1} parent=5 // pred_fallthru
        _
      %p223 = scmp.lt.s32.totalorder %s18, 4
      // Predicated region
      $region29: #{tpu_custom_call.1} parent=5 // pred_check
        %p224 = pneg %p223
      $region30: #{tpu_custom_call.1} parent=5 // pred_check_branch
        %226 = sbr.rel (%p224) target = $region32
      $region31: #{tpu_custom_call.1} parent=5 // pred_region
        // Predicated region
        $region33: #{tpu_custom_call.1} parent=31 // pred_check
          %p227 = pneg %p52
        $region34: #{tpu_custom_call.1} parent=31 // pred_check_branch
          %229 = sbr.rel (%p227) target = $region36
        $region35: #{tpu_custom_call.1} parent=31 // pred_region
          %s230 = sand.u32 %s42, 1
          %s231 = scalar_lea.sflag [#allocation6], %s230
          %s232 = sand.u32 %s42, 1
          %s233 = smul.addr %s232, 8
          %s234 = scalar_lea.vmem [#allocation5], %s233
          %s236 = ssub.s32 128, 128
          %237 = vsyncadd %s231, %s236
          %s238 = smul.addr %s26, 2
          %s239 = smul.addr %s25, 4
          %s240 = sadd.s32 %s238, %s239
          %s241 = smul.addr %s240, 64
          %s242 = scalar_lea.hbm %s0, %s241
          %s244 = sshll.u32 %s234, 4
          %s245 = int_to_ptr.vmem [resolvable:$true] %s244
          %247 = dma.hbm_to_vmem [thread:$0]  %s242, 128, %s245, %s231
        $region36: #{tpu_custom_call.1} parent=31 // pred_fallthru
          _
        // Predicated region
        $region37: #{tpu_custom_call.1} parent=31 // pred_check
          %p248 = pneg %p162
        $region38: #{tpu_custom_call.1} parent=31 // pred_check_branch
          %250 = sbr.rel (%p248) target = $region40
        $region39: #{tpu_custom_call.1} parent=31 // pred_region
          %p251 = scmp.lt.s32.totalorder %s26, 1
          %s252 = scalar_select %p251, %s26, 1
          %s253 = smul.addr %s252, 2
          %s254 = scalar_lea.vmem %s5, %s253
        $region40: #{tpu_custom_call.1} parent=31 // pred_fallthru
          _
      $region32: #{tpu_custom_call.1} parent=5 // pred_fallthru
        _
      %p255 = scmp.le.s32.totalorder 1, %s18
      %p256 = scmp.lt.s32.totalorder %s18, 5
      %p257 = pnand %p255, %p256
      %p258 = pneg %p257
      // Predicated region
      $region41: #{tpu_custom_call.1} parent=5 // pred_check
        _
      $region42: #{tpu_custom_call.1} parent=5 // pred_check_branch
        %260 = sbr.rel (%p257) target = $region44
      $region43: #{tpu_custom_call.1} parent=5 // pred_region
        %s261 = ssub.s32 %s18, 1
        %s262 = sand.u32 %s45, 1
        %s263 = scalar_lea.sflag [#allocation6], %s262
        %s264 = sand.u32 %s45, 1
        %s265 = smul.addr %s264, 8
        %s266 = scalar_lea.vmem [#allocation5], %s265
        // Predicated region
        $region45: #{tpu_custom_call.1} parent=43 // pred_check
          %p267 = pneg %p58
        $region46: #{tpu_custom_call.1} parent=43 // pred_check_branch
          %269 = sbr.rel (%p267) target = $region48
        $region47: #{tpu_custom_call.1} parent=43 // pred_region
          %270 = dma.done %s263, 128
        $region48: #{tpu_custom_call.1} parent=43 // pred_fallthru
          _
        %s271 = sand.u32 %s45, 1
        %s272 = scalar_lea.sflag [#allocation6], %s271
        %s273 = sand.u32 %s45, 1
        %s274 = smul.addr %s273, 8
        %s275 = scalar_lea.vmem [#allocation5], %s274
        %p276 = pneg %p58
        %p277 = pneg %p55
        %p278 = pneg %p79
        %p279 = pneg %p76
        %p280 = pneg %p100
        %p281 = pneg %p97
        %p282 = pneg %p121
        %p283 = pneg %p118
        %p284 = pneg %p142
        %p285 = pneg %p139
        %p286 = scmp.lt.s32.totalorder %s28, 1
        %s287 = scalar_select %p286, %s28, 1
        %s288 = smul.addr %s287, 2
        %s289 = scalar_lea.vmem %s5, %s288
        %p290 = pneg %p168
        %p291 = pneg %p165
        %p292 = pneg %p196
        %p293 = pneg %p193
        %s294 = sand.u32 %s183, 1
        %s295 = scalar_lea.sflag [#allocation7], %s294
        %s296 = sand.u32 %s183, 1
        %s297 = smul.addr %s296, 16
        %s298 = scalar_lea.vmem [#allocation8], %s297
        %p299 = scmp.lt.s32.totalorder %s28, 1
        %s300 = scalar_select %p299, %s28, 1
        %s301 = smul.addr %s300, 2
        %s302 = scalar_lea.vmem %s5, %s301
        %v304 = vld [vmem:[%s266] sm:$0xff]
        %vm305 = vcmask 1043456
        %vm306 = vcmask 441348
        %vm307 = vmor %vm306, %vm305
        %308 = vst.msk [vmem:[#allocation2] sm:$0xff] %vm307, %v304
        %v309 = vld [vmem:[%s266] sm:$0xff]
        %311 = vrot.lane.b32.xlu0 %v309, 127
        %v312 = vpop.permute.xlu0 %311
        %v313 = vrot.slane %v312, 4
        %vm314 = vcmask 1039360
        %v315 = vsel %vm314, %v312, %v313
        %317 = vst.msk [vmem:[#allocation2 + $0x8] sm:$0xff] %vm307, %v315
        %v318 = vld [vmem:[%s266] sm:$0xff]
        %320 = vrot.lane.b32.xlu0 %v318, 126
        %v321 = vpop.permute.xlu0 %320
        %v322 = vrot.slane %v321, 4
        %vm323 = vcmask 1031168
        %v324 = vsel %vm323, %v321, %v322
        %326 = vst.msk [vmem:[#allocation2 + $0x10] sm:$0xff] %vm307, %v324
        %v327 = vld [vmem:[%s266] sm:$0xff]
        %329 = vrot.lane.b32.xlu0 %v327, 110
        %v330 = vpop.permute.xlu0 %329
        %v331 = vrot.slane %v330, 4
        %vm332 = vcmask 900096
        %v333 = vsel %vm332, %v330, %v331
        %335 = vst.msk [vmem:[#allocation2 + $0x18] sm:$0xff] %vm307, %v333
        %v336 = vld [vmem:[%s266] sm:$0xff]
        %338 = vrot.lane.b32.xlu0 %v336, 109
        %v339 = vpop.permute.xlu0 %338
        %v340 = vrot.slane %v339, 4
        %vm341 = vcmask 891904
        %v342 = vsel %vm341, %v339, %v340
        %344 = vst.msk [vmem:[#allocation2 + $0x20] sm:$0xff] %vm307, %v342
        %v345 = vld [vmem:[%s266] sm:$0xff]
        %347 = vrot.lane.b32.xlu0 %v345, 108
        %v348 = vpop.permute.xlu0 %347
        %v349 = vrot.slane %v348, 4
        %vm350 = vcmask 883712
        %v351 = vsel %vm350, %v348, %v349
        %353 = vst.msk [vmem:[#allocation2 + $0x28] sm:$0xff] %vm307, %v351
        %v354 = vld [vmem:[%s266] sm:$0xff]
        %356 = vrot.lane.b32.xlu0 %v354, 92
        %v357 = vpop.permute.xlu0 %356
        %v358 = vrot.slane %v357, 4
        %vm359 = vcmask 752640
        %v360 = vsel %vm359, %v357, %v358
        %362 = vst.msk [vmem:[#allocation2 + $0x30] sm:$0xff] %vm307, %v360
        %v363 = vld [vmem:[%s266] sm:$0xff]
        %365 = vrot.lane.b32.xlu0 %v363, 91
        %v366 = vpop.permute.xlu0 %365
        %v367 = vrot.slane %v366, 4
        %vm368 = vcmask 744448
        %v369 = vsel %vm368, %v366, %v367
        %371 = vst.msk [vmem:[#allocation2 + $0x38] sm:$0xff] %vm307, %v369
        %v372 = vld [vmem:[%s266] sm:$0xff]
        %374 = vrot.lane.b32.xlu0 %v372, 90
        %v375 = vpop.permute.xlu0 %374
        %v376 = vrot.slane %v375, 4
        %vm377 = vcmask 736256
        %v378 = vsel %vm377, %v375, %v376
        %380 = vst.msk [vmem:[#allocation2 + $0x40] sm:$0xff] %vm307, %v378
        %v381 = vld [vmem:[%s1] sm:$0xf]
        %v382 = vld [vmem:[#allocation2] sm:$0xff]
        %v383 = vld [vmem:[#allocation2 + $0x8] sm:$0xff]
        %v384 = vld [vmem:[#allocation2 + $0x10] sm:$0xff]
        %v385 = vld [vmem:[#allocation2 + $0x18] sm:$0xff]
        %v386 = vld [vmem:[#allocation2 + $0x20] sm:$0xff]
        %v387 = vld [vmem:[#allocation2 + $0x28] sm:$0xff]
        %v388 = vld [vmem:[#allocation2 + $0x30] sm:$0xff]
        %v389 = vld [vmem:[#allocation2 + $0x38] sm:$0xff]
        %v390 = vld [vmem:[#allocation2 + $0x40] sm:$0xff]
        %v391 = vld [vmem:[%s3] sm:$0xff]
        %393 = vset.pattern.permute.xlu0 0
        %394 = vperm.xlu0 %393, %v391
        %v395 = vpop.permute.xlu0 %394
        %v406 = vunpack.c.l.b16 %v382
        %v407 = vunpack.c.h.b16 %v382
        %v408 = vunpack.c.l.b16 %v383
        %v409 = vunpack.c.h.b16 %v383
        %v410 = vunpack.c.l.b16 %v384
        %v411 = vunpack.c.h.b16 %v384
        %v412 = vunpack.c.l.b16 %v385
        %v413 = vunpack.c.h.b16 %v385
        %v414 = vunpack.c.l.b16 %v386
        %v415 = vunpack.c.h.b16 %v386
        %v416 = vunpack.c.l.b16 %v387
        %v417 = vunpack.c.h.b16 %v387
        %v418 = vunpack.c.l.b16 %v388
        %v419 = vunpack.c.h.b16 %v388
        %v420 = vunpack.c.l.b16 %v389
        %v421 = vunpack.c.h.b16 %v389
        %v422 = vunpack.c.l.b16 %v390
        %v423 = vunpack.c.h.b16 %v390
        %v424 = vpack.c.b16 %v408, %v406
        %v425 = vpack.c.b16 %v409, %v407
        %v426 = vpack.c.b16 %v412, %v410
        %v427 = vpack.c.b16 %v413, %v411
        %v428 = vpack.c.b16 %v416, %v414
        %v429 = vpack.c.b16 %v417, %v415
        %v430 = vpack.c.b16 %v420, %v418
        %v431 = vpack.c.b16 %v421, %v419
        %v432 = vpack.c.b16 %v422, %v422
        %v433 = vpack.c.b16 %v423, %v423
        %vm442 = vcmask 588800
        %v444 = vsel %vm442, %v381, 0
        %v447 = vsel %vm305, %v432, 0
        %v450 = vsel %vm305, %v433, 0
        %452 = vmatprep.subr.bf16.mxu0 %v425
        %453 = vmatpush1.bf16.msra.mxu0 %v424
        %454 = vmatprep.subr.bf16.mxu0 %v427
        %455 = vmatpush1.bf16.msra.mxu0 %v426
        %456 = vmatprep.subr.bf16.mxu0 %v429
        %457 = vmatpush1.bf16.msra.mxu0 %v428
        %458 = vmatprep.subr.bf16.mxu0 %v431
        %459 = vmatpush1.bf16.msra.mxu0 %v430
        %460 = vmatprep.subr.bf16.mxu0 %v450
        %461 = vmatpush1.bf16.msra.mxu0 %v447
        %462 = vmatprep.subr.bf16.mxu0 0
        %463 = vmatpush1.bf16.msra.mxu0 0
        %464 = vmatprep.subr.bf16.mxu0 0
        %465 = vmatpush1.bf16.msra.mxu0 0
        %466 = vmatprep.subr.bf16.mxu0 0
        %467 = vmatpush1.bf16.msra.mxu0 0
        %468 = vmatprep.subr.bf16.mxu0 0
        %469 = vmatpush1.bf16.msra.mxu0 0
        %470 = vmatprep.subr.bf16.mxu0 0
        %471 = vmatpush1.bf16.msra.mxu0 0
        %472 = vmatprep.subr.bf16.mxu0 0
        %473 = vmatpush1.bf16.msra.mxu0 0
        %474 = vmatprep.subr.bf16.mxu0 0
        %475 = vmatpush1.bf16.msra.mxu0 0
        %476 = vmatprep.subr.bf16.mxu0 0
        %477 = vmatpush1.bf16.msra.mxu0 0
        %478 = vmatprep.subr.bf16.mxu0 0
        %479 = vmatpush1.bf16.msra.mxu0 0
        %480 = vmatprep.subr.bf16.mxu0 0
        %481 = vmatpush1.bf16.msra.mxu0 0
        %482 = vmatprep.subr.bf16.mxu0 0
        %483 = vmatpush1.bf16.msra.mxu0 0
        %484 = vmatprep.mubr.bf16.mxu0 0
        %485 = vmatmul.mubr.bf16.gmra.mrb[0].mxu0 %v444
        %v486 = vpop.f32.mrb[0].mxu0
        %v487 = vadd.f32 %v395, %v486
        %v488 = vpop.f32.mrb[0].mxu0
        %v489 = vadd.f32 %v395, %v488
        %v490 = vpop.f32.mrb[0].mxu0
        %v491 = vpop.f32.mrb[0].mxu0
        %492 = vdwg.mxu0
        %v493 = vmax.f32 %v487, 0.0
        %v494 = vmax.f32 %v489, 0.0
        %v495 = vld [vmem:[%s302] sm:$0x3]
        %v497 = vlaneseq
        %v498 = vshrl.u32 %v497, 7
        %v499 = vsub.s32 0, %v498
        %v500 = vrot.slane %v495, %v499
        %v501 = vlaneseq
        %v502 = vshrl.u32 %v501, 7
        %v503 = vsub.s32 1, %v502
        %v504 = vrot.slane %v495, %v503
        %v507 = vmul.f32 %v493, %v500
        %v508 = vmul.f32 %v494, %v504
        %v509 = vpack.c.bf16 %v507, %v507
        %v510 = vpack.c.bf16 %v508, %v508
        %v513 = vunpack.c.l.b16 %v509
        %v514 = vunpack.c.l.b16 %v510
        %v515 = vpack.c.b16 %v514, %v513
        %517 = vst.msk [vmem:[#allocation3] sm:$0xff] %vm307, %v515
        %v518 = vld [vmem:[#allocation3] sm:$0xff]
        %vm519 = vcmask 130052
        %vm520 = vmor %vm519, %vm305
        %521 = vst.msk [vmem:[#allocation4] sm:$0xff] %vm520, %v518
        %v522 = vld [vmem:[#allocation3] sm:$0xff]
        %524 = vrot.lane.b32.xlu0 %v522, 127
        %v525 = vpop.permute.xlu0 %524
        %v526 = vrot.slane %v525, 4
        %v527 = vsel %vm314, %v525, %v526
        %529 = vst.msk [vmem:[#allocation4 + $0x8] sm:$0xff] %vm520, %v527
        %v530 = vld [vmem:[#allocation3] sm:$0xff]
        %532 = vrot.lane.b32.xlu0 %v530, 126
        %v533 = vpop.permute.xlu0 %532
        %v534 = vrot.slane %v533, 4
        %v535 = vsel %vm323, %v533, %v534
        %537 = vst.msk [vmem:[#allocation4 + $0x10] sm:$0xff] %vm520, %v535
        %v538 = vld [vmem:[#allocation3] sm:$0xff]
        %540 = vrot.lane.b32.xlu0 %v538, 110
        %v541 = vpop.permute.xlu0 %540
        %v542 = vrot.slane %v541, 4
        %v543 = vsel %vm332, %v541, %v542
        %545 = vst.msk [vmem:[#allocation4 + $0x18] sm:$0xff] %vm520, %v543
        %v546 = vld [vmem:[#allocation3] sm:$0xff]
        %548 = vrot.lane.b32.xlu0 %v546, 109
        %v549 = vpop.permute.xlu0 %548
        %v550 = vrot.slane %v549, 4
        %v551 = vsel %vm341, %v549, %v550
        %553 = vst.msk [vmem:[#allocation4 + $0x20] sm:$0xff] %vm520, %v551
        %v554 = vld [vmem:[#allocation3] sm:$0xff]
        %556 = vrot.lane.b32.xlu0 %v554, 108
        %v557 = vpop.permute.xlu0 %556
        %v558 = vrot.slane %v557, 4
        %v559 = vsel %vm350, %v557, %v558
        %561 = vst.msk [vmem:[#allocation4 + $0x28] sm:$0xff] %vm520, %v559
        %v562 = vld [vmem:[#allocation3] sm:$0xff]
        %564 = vrot.lane.b32.xlu0 %v562, 92
        %v565 = vpop.permute.xlu0 %564
        %v566 = vrot.slane %v565, 4
        %v567 = vsel %vm359, %v565, %v566
        %569 = vst.msk [vmem:[#allocation4 + $0x30] sm:$0xff] %vm520, %v567
        %v570 = vld [vmem:[#allocation3] sm:$0xff]
        %572 = vrot.lane.b32.xlu0 %v570, 91
        %v573 = vpop.permute.xlu0 %572
        %v574 = vrot.slane %v573, 4
        %v575 = vsel %vm368, %v573, %v574
        %577 = vst.msk [vmem:[#allocation4 + $0x38] sm:$0xff] %vm520, %v575
        %v578 = vld [vmem:[#allocation3] sm:$0xff]
        %580 = vrot.lane.b32.xlu0 %v578, 90
        %v581 = vpop.permute.xlu0 %580
        %v582 = vrot.slane %v581, 4
        %v583 = vsel %vm377, %v581, %v582
        %585 = vst.msk [vmem:[#allocation4 + $0x40] sm:$0xff] %vm520, %v583
        %v586 = vld [vmem:[%s2] sm:$0xf]
        %v587 = vld [vmem:[#allocation4] sm:$0xff]
        %v588 = vld [vmem:[#allocation4 + $0x8] sm:$0xff]
        %v589 = vld [vmem:[#allocation4 + $0x10] sm:$0xff]
        %v590 = vld [vmem:[#allocation4 + $0x18] sm:$0xff]
        %v591 = vld [vmem:[#allocation4 + $0x20] sm:$0xff]
        %v592 = vld [vmem:[#allocation4 + $0x28] sm:$0xff]
        %v593 = vld [vmem:[#allocation4 + $0x30] sm:$0xff]
        %v594 = vld [vmem:[#allocation4 + $0x38] sm:$0xff]
        %v595 = vld [vmem:[#allocation4 + $0x40] sm:$0xff]
        %v596 = vld [vmem:[%s4] sm:$0xff]
        %598 = vset.pattern.permute.xlu0 0
        %599 = vperm.xlu0 %598, %v596
        %v600 = vpop.permute.xlu0 %599
        %v611 = vunpack.c.l.b16 %v587
        %v612 = vunpack.c.h.b16 %v587
        %v613 = vunpack.c.l.b16 %v588
        %v614 = vunpack.c.h.b16 %v588
        %v615 = vunpack.c.l.b16 %v589
        %v616 = vunpack.c.h.b16 %v589
        %v617 = vunpack.c.l.b16 %v590
        %v618 = vunpack.c.h.b16 %v590
        %v619 = vunpack.c.l.b16 %v591
        %v620 = vunpack.c.h.b16 %v591
        %v621 = vunpack.c.l.b16 %v592
        %v622 = vunpack.c.h.b16 %v592
        %v623 = vunpack.c.l.b16 %v593
        %v624 = vunpack.c.h.b16 %v593
        %v625 = vunpack.c.l.b16 %v594
        %v626 = vunpack.c.h.b16 %v594
        %v627 = vunpack.c.l.b16 %v595
        %v628 = vunpack.c.h.b16 %v595
        %v629 = vpack.c.b16 %v613, %v611
        %v630 = vpack.c.b16 %v614, %v612
        %v631 = vpack.c.b16 %v617, %v615
        %v632 = vpack.c.b16 %v618, %v616
        %v633 = vpack.c.b16 %v621, %v619
        %v634 = vpack.c.b16 %v622, %v620
        %v635 = vpack.c.b16 %v625, %v623
        %v636 = vpack.c.b16 %v626, %v624
        %v637 = vpack.c.b16 %v627, %v627
        %v638 = vpack.c.b16 %v628, %v628
        %v648 = vsel %vm442, %v586, 0
        %v651 = vsel %vm305, %v637, 0
        %v654 = vsel %vm305, %v638, 0
        %656 = vmatprep.subr.bf16.mxu0 %v630
        %657 = vmatpush1.bf16.msra.mxu0 %v629
        %658 = vmatprep.subr.bf16.mxu0 %v632
        %659 = vmatpush1.bf16.msra.mxu0 %v631
        %660 = vmatprep.subr.bf16.mxu0 %v634
        %661 = vmatpush1.bf16.msra.mxu0 %v633
        %662 = vmatprep.subr.bf16.mxu0 %v636
        %663 = vmatpush1.bf16.msra.mxu0 %v635
        %664 = vmatprep.subr.bf16.mxu0 %v654
        %665 = vmatpush1.bf16.msra.mxu0 %v651
        %666 = vmatprep.subr.bf16.mxu0 0
        %667 = vmatpush1.bf16.msra.mxu0 0
        %668 = vmatprep.subr.bf16.mxu0 0
        %669 = vmatpush1.bf16.msra.mxu0 0
        %670 = vmatprep.subr.bf16.mxu0 0
        %671 = vmatpush1.bf16.msra.mxu0 0
        %672 = vmatprep.subr.bf16.mxu0 0
        %673 = vmatpush1.bf16.msra.mxu0 0
        %674 = vmatprep.subr.bf16.mxu0 0
        %675 = vmatpush1.bf16.msra.mxu0 0
        %676 = vmatprep.subr.bf16.mxu0 0
        %677 = vmatpush1.bf16.msra.mxu0 0
        %678 = vmatprep.subr.bf16.mxu0 0
        %679 = vmatpush1.bf16.msra.mxu0 0
        %680 = vmatprep.subr.bf16.mxu0 0
        %681 = vmatpush1.bf16.msra.mxu0 0
        %682 = vmatprep.subr.bf16.mxu0 0
        %683 = vmatpush1.bf16.msra.mxu0 0
        %684 = vmatprep.subr.bf16.mxu0 0
        %685 = vmatpush1.bf16.msra.mxu0 0
        %686 = vmatprep.subr.bf16.mxu0 0
        %687 = vmatpush1.bf16.msra.mxu0 0
        %688 = vmatprep.mubr.bf16.mxu0 0
        %689 = vmatmul.mubr.bf16.gmra.mrb[0].mxu0 %v648
        %v690 = vpop.f32.mrb[0].mxu0
        %v691 = vadd.f32 %v600, %v690
        %v692 = vpop.f32.mrb[0].mxu0
        %v693 = vadd.f32 %v600, %v692
        %v694 = vpop.f32.mrb[0].mxu0
        %v695 = vpop.f32.mrb[0].mxu0
        %696 = vdwg.mxu0
        %v697 = vmax.f32 %v691, 0.0
        %v698 = vmax.f32 %v693, 0.0
        %699 = vst [vmem:[%s298] sm:$0xff] %v697
        %vm700 = vcmask 130048
        %701 = vst.msk [vmem:[%s298 + $0x8] sm:$0xff] %vm700, %v698
        %s702 = sand.u32 %s183, 1
        %s703 = scalar_lea.sflag [#allocation7], %s702
        %s704 = sand.u32 %s183, 1
        %s705 = smul.addr %s704, 16
        %s706 = scalar_lea.vmem [#allocation8], %s705
        // Predicated region
        $region49: #{tpu_custom_call.1} parent=43 // pred_check
          %p707 = pneg %p193
        $region50: #{tpu_custom_call.1} parent=43 // pred_check_branch
          %709 = sbr.rel (%p707) target = $region52
        $region51: #{tpu_custom_call.1} parent=43 // pred_region
          %s711 = ssub.s32 256, 256
          %712 = vsyncadd %s703, %s711
          %s713 = smul.addr %s28, 2
          %s714 = smul.addr %s27, 4
          %s715 = sadd.s32 %s713, %s714
          %s716 = smul.addr %s715, 128
          %s717 = scalar_lea.hbm %s6, %s716
          %s719 = sshll.u32 %s706, 4
          %s720 = int_to_ptr.vmem [resolvable:$true] %s719
          %722 = dma.vmem_to_hbm [thread:$0]  %s720, 256, %s717, %s703
        $region52: #{tpu_custom_call.1} parent=43 // pred_fallthru
          _
      $region44: #{tpu_custom_call.1} parent=5 // pred_fallthru
        _
      %p723 = scmp.le.s32.totalorder 2, %s18
      // Predicated region
      $region53: #{tpu_custom_call.1} parent=5 // pred_check
        %p724 = pneg %p723
      $region54: #{tpu_custom_call.1} parent=5 // pred_check_branch
        %726 = sbr.rel (%p724) target = $region56
      $region55: #{tpu_custom_call.1} parent=5 // pred_region
        %s727 = ssub.s32 %s18, 2
        // Predicated region
        $region57: #{tpu_custom_call.1} parent=55 // pred_check
          %p728 = pneg %p199
        $region58: #{tpu_custom_call.1} parent=55 // pred_check_branch
          %730 = sbr.rel (%p728) target = $region60
        $region59: #{tpu_custom_call.1} parent=55 // pred_region
          %s731 = sand.u32 %s184, 1
          %s732 = scalar_lea.sflag [#allocation7], %s731
          %s733 = sand.u32 %s184, 1
          %s734 = smul.addr %s733, 16
          %s735 = scalar_lea.vmem [#allocation8], %s734
          %736 = dma.done %s732, 256
        $region60: #{tpu_custom_call.1} parent=55 // pred_fallthru
          _
      $region56: #{tpu_custom_call.1} parent=5 // pred_fallthru
        _
    $region6: #{tpu_custom_call.1} parent=1 // loop_footer
      %s22 = sadd.s32 1, %s18
    $region7: #{tpu_custom_call.1} parent=1 // loop_footer_branch
      %17 = sbr.rel target = $region3
    $region8: #{tpu_custom_call.1} parent=1 // loop_exit
      _
    %737 = vsyncpa [#allocation6], 1
    %s738 = scalar_lea.sflag [#allocation6], 1
    %739 = vsyncpa %s738, 1
    %740 = vsyncpa [#allocation7], 1
    %s741 = scalar_lea.sflag [#allocation7], 1
    %742 = vsyncpa %s741, 1

</llo_original>
